<compile_context>
chip_gen: v5e
topology: v5e:2x2
jax: 0.10.0
libtpu: 0.0.40
codegen_flags: <defaults>
</compile_context>

<pallas_src>
import jax
import jax.numpy as jnp
from jax.experimental import pallas as pl
from jax.experimental.pallas import tpu as pltpu

HIDDEN = 128       # hidden width of each path (pi1 / v1)
OUT_LANES = 128    # lane-dense output slab width (>= a_dim + 1)


def _net_fused_kernel(x_ref, w_h_ref, w_o_ref, b_ref, out_ref):
    """Fused actor+critic forward, everything VMEM-resident.

    x_ref:   [B, s_dim]          float32 states
    w_h_ref: [s_dim, 2*HIDDEN]   columns 0:128 -> pi1, 128:256 -> v1
    w_o_ref: [2*HIDDEN, OUT_LANES]  block layout (zeros keep paths separate)
    b_ref:   [2, 2*HIDDEN]       row 0 = hidden biases, row 1[:OUT_LANES] = output biases
    out_ref: [B, OUT_LANES]      cols [0:a_dim] = logits, col a_dim = values
    """
    x = x_ref[...]
    b = b_ref[...]
    b_h = b[0:1, :]                 # [1, 256]
    b_o = b[1:2, 0:OUT_LANES]       # [1, 128]

    # One fused hidden matmul for both paths + one tanh over [B, 256].
    h = jnp.tanh(
        jnp.dot(x, w_h_ref[...], preferred_element_type=jnp.float32) + b_h
    )

    # One fused output matmul; zero blocks in w_o prevent path mixing.
    out = jnp.dot(h, w_o_ref[...], preferred_element_type=jnp.float32) + b_o
    out_ref[...] = out.astype(out_ref.dtype)


def prepare_params(params):
    """One-time packing of PyTorch-layout params into the kernel layout.

    Call after init / after each optimizer step — NOT per forward — so the
    per-step graph contains only the pallas_call.
    """
    a_dim = params["pi2_w"].shape[0]
    s_dim = params["pi1_w"].shape[1]
    assert a_dim + 1 <= OUT_LANES, "a_dim too large for the packed output slab"

    # Hidden weights: [s_dim, 256].
    w_h = jnp.concatenate(
        [params["pi1_w"].T, params["v1_w"].T], axis=1
    ).astype(jnp.float32)

    # Output weights: [256, 128], zero-initialized so padded/cross lanes are 0.
    w_o = jnp.zeros((2 * HIDDEN, OUT_LANES), jnp.float32)
    w_o = w_o.at[:HIDDEN, :a_dim].set(params["pi2_w"].T)
    w_o = w_o.at[HIDDEN:, a_dim:a_dim + 1].set(params["v2_w"].T)

    # Biases packed into one [2, 256] array (zero padding elsewhere).
    b = jnp.zeros((2, 2 * HIDDEN), jnp.float32)
    b = b.at[0, :HIDDEN].set(params["pi1_b"])
    b = b.at[0, HIDDEN:].set(params["v1_b"])
    b = b.at[1, :a_dim].set(params["pi2_b"])
    b = b.at[1, a_dim].set(params["v2_b"][0])

    return {"w_h": w_h, "w_o": w_o, "b": b, "a_dim": a_dim, "s_dim": s_dim}


def net_forward(x, packed):
    """Forward pass. Returns (logits [B, a_dim], values [B, 1])."""
    B = x.shape[0]
    a_dim = packed["a_dim"]
    s_dim = packed["s_dim"]

    flops = 2 * B * (s_dim * 2 * HIDDEN + 2 * HIDDEN * OUT_LANES)
    bytes_accessed = 4 * (
        x.size
        + packed["w_h"].size
        + packed["w_o"].size
        + packed["b"].size
        + B * OUT_LANES
    )
    vmem = pl.BlockSpec(memory_space=pltpu.MemorySpace.VMEM)

    out = pl.pallas_call(
        _net_fused_kernel,
        out_shape=jax.ShapeDtypeStruct((B, OUT_LANES), jnp.float32),
        in_specs=[vmem, vmem, vmem, vmem],
        out_specs=vmem,
        cost_estimate=pl.CostEstimate(
            flops=flops,
            transcendentals=B * 2 * HIDDEN,
            bytes_accessed=bytes_accessed,
        ),
    )(x, packed["w_h"], packed["w_o"], packed["b"])

    logits = out[:, :a_dim]
    values = out[:, a_dim:a_dim + 1]
    return logits, values


def init_params(key, s_dim, a_dim):
    """Deterministic init matching Net.initialize_weights:
    weights ~ Normal(0, 0.1), biases = 0."""
    k1, k2, k3, k4 = jax.random.split(key, 4)
    std = 0.1
    return {
        "pi1_w": std * jax.random.normal(k1, (128, s_dim), jnp.float32),
        "pi1_b": jnp.zeros((128,), jnp.float32),
        "pi2_w": std * jax.random.normal(k2, (a_dim, 128), jnp.float32),
        "pi2_b": jnp.zeros((a_dim,), jnp.float32),
        "v1_w": std * jax.random.normal(k3, (128, s_dim), jnp.float32),
        "v1_b": jnp.zeros((128,), jnp.float32),
        "v2_w": std * jax.random.normal(k4, (1, 128), jnp.float32),
        "v2_b": jnp.zeros((1,), jnp.float32),
    }


def net_forward_ref(x, params):
    """Pure-JAX reference (PyTorch-layout params) for correctness checking."""
    pi1 = jnp.tanh(x @ params["pi1_w"].T + params["pi1_b"])
    logits = pi1 @ params["pi2_w"].T + params["pi2_b"]
    v1 = jnp.tanh(x @ params["v1_w"].T + params["v1_b"])
    values = v1 @ params["v2_w"].T + params["v2_b"]
    return logits, values


if __name__ == "__main__":
    # CartPole-like dims: state=4, actions=2; small batch (multiple of 8).
    B, S_DIM, A_DIM = 8, 4, 2

    key = jax.random.PRNGKey(0)
    kx, kp = jax.random.split(key)
    x = jax.random.normal(kx, (B, S_DIM), jnp.float32)
    params = init_params(kp, S_DIM, A_DIM)

    # One-time param packing (would be redone only after optimizer steps).
    packed = prepare_params(params)

    logits, values = net_forward(x, packed)
    logits, values = jax.block_until_ready((logits, values))

    # Sanity check against pure-JAX reference on the original layout.
    ref_logits, ref_values = net_forward_ref(x, params)
    assert logits.shape == (B, A_DIM) and values.shape == (B, 1)
    assert jnp.allclose(logits, ref_logits, atol=1e-5, rtol=1e-5)
    assert jnp.allclose(values, ref_values, atol=1e-5, rtol=1e-5)

    print("KERNEL_OK")
</pallas_src>

<mosaic_0001>
module attributes {stable_mosaic.version = 11 : i64} {
  func.func @_net_fused_kernel(%arg0: memref<8x4xf32, #tpu.memory_space<vmem>>, %arg1: memref<4x256xf32, #tpu.memory_space<vmem>>, %arg2: memref<256x128xf32, #tpu.memory_space<vmem>>, %arg3: memref<2x256xf32, #tpu.memory_space<vmem>>, %arg4: memref<8x128xf32, #tpu.memory_space<vmem>>) attributes {dimension_semantics = [], scalar_prefetch = 0 : i64, scratch_operands = 0 : i64, tpu.core_type = #tpu.core_type<tc>} {
    %c0 = arith.constant 0 : index
    %c0_0 = arith.constant 0 : index
    %0 = vector.load %arg0[%c0, %c0_0] : memref<8x4xf32, #tpu.memory_space<vmem>>, vector<8x4xf32>
    %c0_1 = arith.constant 0 : index
    %c0_2 = arith.constant 0 : index
    %1 = vector.load %arg3[%c0_1, %c0_2] : memref<2x256xf32, #tpu.memory_space<vmem>>, vector<2x256xf32>
    %2 = vector.extract_strided_slice %1 {offsets = [0, 0], sizes = [1, 256], strides = [1, 1]} : vector<2x256xf32> to vector<1x256xf32>
    %3 = vector.extract_strided_slice %1 {offsets = [1, 0], sizes = [1, 128], strides = [1, 1]} : vector<2x256xf32> to vector<1x128xf32>
    %c0_3 = arith.constant 0 : index
    %c0_4 = arith.constant 0 : index
    %4 = vector.load %arg1[%c0_3, %c0_4] : memref<4x256xf32, #tpu.memory_space<vmem>>, vector<4x256xf32>
    %cst = arith.constant dense<0.000000e+00> : vector<8x256xf32>
    %5 = tpu.matmul %0, %4, %cst {dimension_numbers = #tpu.dot_dimension_numbers<[1], [0], [0], [1], [0, 0, 1, 1], [], []>} : vector<8x4xf32>, vector<4x256xf32>, vector<8x256xf32> -> vector<8x256xf32>
    %6 = vector.broadcast %2 : vector<1x256xf32> to vector<8x256xf32>
    %7 = arith.addf %5, %6 : vector<8x256xf32>
    %8 = math.tanh %7 : vector<8x256xf32>
    %c0_5 = arith.constant 0 : index
    %c0_6 = arith.constant 0 : index
    %9 = vector.load %arg2[%c0_5, %c0_6] : memref<256x128xf32, #tpu.memory_space<vmem>>, vector<256x128xf32>
    %cst_7 = arith.constant dense<0.000000e+00> : vector<8x128xf32>
    %10 = tpu.matmul %8, %9, %cst_7 {dimension_numbers = #tpu.dot_dimension_numbers<[1], [0], [0], [1], [0, 0, 1, 1], [], []>} : vector<8x256xf32>, vector<256x128xf32>, vector<8x128xf32> -> vector<8x128xf32>
    %11 = vector.broadcast %3 : vector<1x128xf32> to vector<8x128xf32>
    %12 = arith.addf %10, %11 : vector<8x128xf32>
    %c0_8 = arith.constant 0 : index
    %c0_9 = arith.constant 0 : index
    %13 = vector.load %arg4[%c0_8, %c0_9] : memref<8x128xf32, #tpu.memory_space<vmem>>, vector<8x128xf32>
    tpu.vector_store %arg4[%c0_8, %c0_9], %12 {strides = array<i32>} : memref<8x128xf32, #tpu.memory_space<vmem>>, vector<8x128xf32>,
    return
  }
}

</mosaic_0001>

<llo_original>
// kernel: tpu_custom_call.1
$region0: #{tpu_custom_call.1}
  #allocation0 [shape = 'u32[]', space=smem, size = 0x4, offset = 0x4, fixed_abs, tag = 'smem constant byte address 0x4 - core index']
  #allocation1 [shape = 'u32[72,128]{1,0:T(1,128)}', space=vmem, size = 0x9000, scoped, tag = 'internal scratch']
  %s0 = inlined_call_operand.vmem [shape: f32[8,4], index: 0, kind: input, shape index: {}]
  %s1 = inlined_call_operand.vmem [shape: f32[4,256], index: 1, kind: input, shape index: {}]
  %s2 = inlined_call_operand.hbm [shape: f32[256,128], index: 2, kind: input, shape index: {}]
  %s3 = inlined_call_operand.vmem [shape: f32[2,256], index: 3, kind: input, shape index: {}]
  %s4 = inlined_call_operand.hbm [shape: f32[8,128], index: 4, kind: output, shape index: {}]
  %s5 = sld [smem:[#allocation0]]
  $region30: #{tpu_custom_call.1} parent=0
    _
  %s7 = ssub.s32 1, %s5
  %s8 = scalar_select 0, %s7, %s5
  $region1: #{tpu_custom_call.1} parent=0
    #allocation2 [shape = 'u8[131072]{0}', space=vmem, size = 0x20000, scoped, tag = 'input window, operand 2, single buffered']
    #allocation3 [shape = 's32[1]{0}', space=sflag, size = 0x4, scoped, tag = 'scoped memory for tpu_custom_call.1']
    #allocation4 [shape = 's32[1]{0}', space=sflag, size = 0x4, scoped, tag = 'scoped memory for tpu_custom_call.1']
    #allocation5 [shape = 'u8[4096]{0}', space=vmem, size = 0x1000, scoped, tag = 'output window, operand 0, single buffered']
    %9 = vsyncpa [#allocation3], 0
    %10 = vsyncpa [#allocation4], 0
    // Predicated region
    $region2: #{tpu_custom_call.1} parent=1 // pred_check
      _
    $region3: #{tpu_custom_call.1} parent=1 // pred_check_branch
      %12 = sbr.rel (0) target = $region5
    $region4: #{tpu_custom_call.1} parent=1 // pred_region
      _
    $region5: #{tpu_custom_call.1} parent=1 // pred_fallthru
      _
    // Predicated region
    $region6: #{tpu_custom_call.1} parent=1 // pred_check
      _
    $region7: #{tpu_custom_call.1} parent=1 // pred_check_branch
      %14 = sbr.rel (0) target = $region9
    $region8: #{tpu_custom_call.1} parent=1 // pred_region
      _
    $region9: #{tpu_custom_call.1} parent=1 // pred_fallthru
      _
    // Predicated region
    $region10: #{tpu_custom_call.1} parent=1 // pred_check
      _
    $region11: #{tpu_custom_call.1} parent=1 // pred_check_branch
      %16 = sbr.rel (0) target = $region13
    $region12: #{tpu_custom_call.1} parent=1 // pred_region
      %18 = vsyncadd [#allocation3], 0
      %s19 = sshll.u32 %s2, 4
      %s20 = int_to_ptr.hbm [resolvable:$true] %s19
      %s21 = sshll.u32 [#allocation2], 4
      %s22 = int_to_ptr.vmem [resolvable:$true] %s21
      %27 = dma.hbm_to_vmem [thread:$0]  %s20, 4096, %s22, [#allocation3], 128, 128, 8
    $region13: #{tpu_custom_call.1} parent=1 // pred_fallthru
      _
    // Predicated region
    $region14: #{tpu_custom_call.1} parent=1 // pred_check
      _
    $region15: #{tpu_custom_call.1} parent=1 // pred_check_branch
      %29 = sbr.rel (0) target = $region17
    $region16: #{tpu_custom_call.1} parent=1 // pred_region
      _
    $region17: #{tpu_custom_call.1} parent=1 // pred_fallthru
      _
    // Predicated region
    $region18: #{tpu_custom_call.1} parent=1 // pred_check
      _
    $region19: #{tpu_custom_call.1} parent=1 // pred_check_branch
      %31 = sbr.rel (0) target = $region21
    $region20: #{tpu_custom_call.1} parent=1 // pred_region
      %33 = dma.done [#allocation3], 4096
    $region21: #{tpu_custom_call.1} parent=1 // pred_fallthru
      _
    %v34 = vld [vmem:[%s0] sm:$0xff]
    %v35 = vld [vmem:[%s3] sm:$0xf]
    %v36 = vld [vmem:[%s1] sm:$0xff]
    %v38 = vperm.slane %v35, 0
    %v39 = vperm.slane %v35, 2
    %v42 = vperm.slane %v38, 0
    %v43 = vperm.slane %v39, 0
    %45 = vst [vmem:[#allocation1] ss:$2 sm:$0xff] %v36
    %v46 = vld.sshfl [vmem:[#allocation1] sm:$0xff pattern:$0x75316420]
    %v47 = vld.sshfl [vmem:[#allocation1 + $0x8] sm:$0xff pattern:$0x75316420]
    %vm48 = vcmask 31744
    %v50 = vsel %vm48, %v34, 0
    %vm52 = vcmask 1043456
    %v53 = vsel %vm52, %v46, 0
    %v55 = vsel %vm52, %v47, 0
    %57 = vmatpush.msra.mxu0 0.0
    %58 = vmatpush.msra.mxu0 0.0
    %59 = vmatpush.msra.mxu0 0.0
    %60 = vmatpush.msra.mxu0 0.0
    %61 = vmatpush.msra.mxu0 0.0
    %62 = vmatpush.msra.mxu0 0.0
    %63 = vmatpush.msra.mxu0 0.0
    %64 = vmatpush.msra.mxu0 0.0
    %65 = vmatpush.msra.mxu0 0.0
    %66 = vmatpush.msra.mxu0 0.0
    %67 = vmatpush.msra.mxu0 0.0
    %68 = vmatpush.msra.mxu0 0.0
    %69 = vmatpush.msra.mxu0 0.0
    %70 = vmatpush.msra.mxu0 0.0
    %71 = vmatpush.msra.mxu0 0.0
    %72 = vmatpush.msra.mxu0 %v53
    %73 = vmatmul.f32.gmra.mxu0 %v50
    %v74 = vpop.f32.mrf.mxu0
    %v75 = vadd.f32 %v42, %v74
    %76 = vdwg.mxu0
    %77 = vmatpush.msra.mxu0 0.0
    %78 = vmatpush.msra.mxu0 0.0
    %79 = vmatpush.msra.mxu0 0.0
    %80 = vmatpush.msra.mxu0 0.0
    %81 = vmatpush.msra.mxu0 0.0
    %82 = vmatpush.msra.mxu0 0.0
    %83 = vmatpush.msra.mxu0 0.0
    %84 = vmatpush.msra.mxu0 0.0
    %85 = vmatpush.msra.mxu0 0.0
    %86 = vmatpush.msra.mxu0 0.0
    %87 = vmatpush.msra.mxu0 0.0
    %88 = vmatpush.msra.mxu0 0.0
    %89 = vmatpush.msra.mxu0 0.0
    %90 = vmatpush.msra.mxu0 0.0
    %91 = vmatpush.msra.mxu0 0.0
    %92 = vmatpush.msra.mxu0 %v55
    %93 = vmatmul.f32.gmra.mxu0 %v50
    %v94 = vpop.f32.mrf.mxu0
    %v95 = vadd.f32 %v43, %v94
    %96 = vdwg.mxu0
    %v97 = vtanh.pop %v75
    %v98 = vtanh.pop %v95
    %v99 = vld [vmem:[#allocation2] sm:$0xff]
    %v100 = vld [vmem:[#allocation2 + $0x8] sm:$0xff]
    %v101 = vld [vmem:[#allocation2 + $0x10] sm:$0xff]
    %v102 = vld [vmem:[#allocation2 + $0x18] sm:$0xff]
    %v103 = vld [vmem:[#allocation2 + $0x20] sm:$0xff]
    %v104 = vld [vmem:[#allocation2 + $0x28] sm:$0xff]
    %v105 = vld [vmem:[#allocation2 + $0x30] sm:$0xff]
    %v106 = vld [vmem:[#allocation2 + $0x38] sm:$0xff]
    %v107 = vld [vmem:[#allocation2 + $0x40] sm:$0xff]
    %v108 = vld [vmem:[#allocation2 + $0x48] sm:$0xff]
    %v109 = vld [vmem:[#allocation2 + $0x50] sm:$0xff]
    %v110 = vld [vmem:[#allocation2 + $0x58] sm:$0xff]
    %v111 = vld [vmem:[#allocation2 + $0x60] sm:$0xff]
    %v112 = vld [vmem:[#allocation2 + $0x68] sm:$0xff]
    %v113 = vld [vmem:[#allocation2 + $0x70] sm:$0xff]
    %v114 = vld [vmem:[#allocation2 + $0x78] sm:$0xff]
    %v115 = vld [vmem:[#allocation2 + $0x80] sm:$0xff]
    %v116 = vld [vmem:[#allocation2 + $0x88] sm:$0xff]
    %v117 = vld [vmem:[#allocation2 + $0x90] sm:$0xff]
    %v118 = vld [vmem:[#allocation2 + $0x98] sm:$0xff]
    %v119 = vld [vmem:[#allocation2 + $0xa0] sm:$0xff]
    %v120 = vld [vmem:[#allocation2 + $0xa8] sm:$0xff]
    %v121 = vld [vmem:[#allocation2 + $0xb0] sm:$0xff]
    %v122 = vld [vmem:[#allocation2 + $0xb8] sm:$0xff]
    %v123 = vld [vmem:[#allocation2 + $0xc0] sm:$0xff]
    %v124 = vld [vmem:[#allocation2 + $0xc8] sm:$0xff]
    %v125 = vld [vmem:[#allocation2 + $0xd0] sm:$0xff]
    %v126 = vld [vmem:[#allocation2 + $0xd8] sm:$0xff]
    %v127 = vld [vmem:[#allocation2 + $0xe0] sm:$0xff]
    %v128 = vld [vmem:[#allocation2 + $0xe8] sm:$0xff]
    %v129 = vld [vmem:[#allocation2 + $0xf0] sm:$0xff]
    %v130 = vld [vmem:[#allocation2 + $0xf8] sm:$0xff]
    %v131 = vperm.slane %v35, 1
    %132 = vmatpush.msra.mxu0 %v114
    %133 = vmatpush.msra.mxu0 %v113
    %134 = vmatpush.msra.mxu0 %v112
    %135 = vmatpush.msra.mxu0 %v111
    %136 = vmatpush.msra.mxu0 %v110
    %137 = vmatpush.msra.mxu0 %v109
    %138 = vmatpush.msra.mxu0 %v108
    %139 = vmatpush.msra.mxu0 %v107
    %140 = vmatpush.msra.mxu0 %v106
    %141 = vmatpush.msra.mxu0 %v105
    %142 = vmatpush.msra.mxu0 %v104
    %143 = vmatpush.msra.mxu0 %v103
    %144 = vmatpush.msra.mxu0 %v102
    %145 = vmatpush.msra.mxu0 %v101
    %146 = vmatpush.msra.mxu0 %v100
    %147 = vmatpush.msra.mxu0 %v99
    %148 = vmatmul.f32.gmra.mxu0 %v97
    %v149 = vpop.f32.mrf.mxu0
    %v150 = vadd.f32 %v131, %v149
    %151 = vdwg.mxu0
    %152 = vmatpush.msra.mxu0 %v130
    %153 = vmatpush.msra.mxu0 %v129
    %154 = vmatpush.msra.mxu0 %v128
    %155 = vmatpush.msra.mxu0 %v127
    %156 = vmatpush.msra.mxu0 %v126
    %157 = vmatpush.msra.mxu0 %v125
    %158 = vmatpush.msra.mxu0 %v124
    %159 = vmatpush.msra.mxu0 %v123
    %160 = vmatpush.msra.mxu0 %v122
    %161 = vmatpush.msra.mxu0 %v121
    %162 = vmatpush.msra.mxu0 %v120
    %163 = vmatpush.msra.mxu0 %v119
    %164 = vmatpush.msra.mxu0 %v118
    %165 = vmatpush.msra.mxu0 %v117
    %166 = vmatpush.msra.mxu0 %v116
    %167 = vmatpush.msra.mxu0 %v115
    %168 = vmatmul.f32.gmra.mxu0 %v98
    %v169 = vpop.f32.mrf.mxu0
    %v170 = vadd.f32 %v150, %v169
    %171 = vdwg.mxu0
    %172 = vst [vmem:[#allocation5] sm:$0xff] %v170
    // Predicated region
    $region22: #{tpu_custom_call.1} parent=1 // pred_check
      _
    $region23: #{tpu_custom_call.1} parent=1 // pred_check_branch
      %174 = sbr.rel (0) target = $region25
    $region24: #{tpu_custom_call.1} parent=1 // pred_region
      %176 = vsyncadd [#allocation4], 0
      %s178 = sshll.u32 [#allocation5], 4
      %s179 = int_to_ptr.vmem [resolvable:$true] %s178
      %s180 = sshll.u32 %s4, 4
      %s181 = int_to_ptr.hbm [resolvable:$true] %s180
      %183 = dma.vmem_to_hbm [thread:$0]  %s179, 128, %s181, [#allocation4]
    $region25: #{tpu_custom_call.1} parent=1 // pred_fallthru
      _
    // Predicated region
    $region26: #{tpu_custom_call.1} parent=1 // pred_check
      _
    $region27: #{tpu_custom_call.1} parent=1 // pred_check_branch
      %185 = sbr.rel (0) target = $region29
    $region28: #{tpu_custom_call.1} parent=1 // pred_region
      %187 = dma.done [#allocation4], 128
    $region29: #{tpu_custom_call.1} parent=1 // pred_fallthru
      _
    %188 = vsyncpa [#allocation3], 1
    %189 = vsyncpa [#allocation4], 1

</llo_original>
